<compile_context>
chip_gen: v5e
topology: v5e:2x2
jax: 0.10.0
libtpu: 0.0.40
codegen_flags: <defaults>
</compile_context>

<pallas_src>
import jax
import jax.numpy as jnp
from jax.experimental import pallas as pl
from jax.experimental.pallas import tpu as pltpu


def _logreg_kernel(x_ref, w_ref, b_ref, o_ref):
    # x_ref: (TB, D) VMEM   w_ref: (D, 1) VMEM   b_ref: (1, 1) SMEM   o_ref: (TB, 1)
    logits = jnp.dot(x_ref[...], w_ref[...], preferred_element_type=jnp.float32)
    logits = logits + b_ref[0, 0]
    o_ref[...] = jax.nn.sigmoid(logits).astype(o_ref.dtype)


def _pick_block_batch(batch, feat_dim, itemsize):
    """Largest multiple-of-8 batch tile whose double-buffered x DMA fits ~16 MiB."""
    budget_bytes = 16 * 1024 * 1024          # safe headroom even on v7x (64 MiB VMEM)
    rows = budget_bytes // (2 * max(feat_dim * itemsize, 1))
    rows = min(rows, 1024, batch)
    if rows >= batch:
        return batch                          # full-extent block (always legal)
    rows = max(8, (rows // 8) * 8)            # respect (8, 128) sublane constraint
    return rows


def logistic_regression(x, weight, bias, *, block_batch=None):
    """x: (B, D), weight: (1, D) (PyTorch layout), bias: (1,) -> sigmoid(x @ W.T + b), shape (B, 1)."""
    B, D = x.shape
    itemsize = x.dtype.itemsize

    w_t = weight.astype(x.dtype).T            # (D, 1), VMEM-resident across grid
    b2 = bias.astype(jnp.float32).reshape(1, 1)  # (1, 1) scalar, lives in SMEM

    if block_batch is None:
        block_batch = _pick_block_batch(B, D, itemsize)
    tb = min(block_batch, B)
    if tb != B and (tb % 8 != 0):             # (8,128): block dim must be /8 or full
        tb = B

    grid = (pl.cdiv(B, tb),)

    cost = pl.CostEstimate(
        flops=2 * B * D,
        transcendentals=B,
        bytes_accessed=B * D * itemsize + D * itemsize + 4 + B * itemsize,
    )

    return pl.pallas_call(
        _logreg_kernel,
        out_shape=jax.ShapeDtypeStruct((B, 1), x.dtype),
        grid_spec=pltpu.PrefetchScalarGridSpec(
            num_scalar_prefetch=0,
            grid=grid,
            in_specs=[
                pl.BlockSpec((tb, D), lambda i: (i, 0)),                 # x tile, pipelined
                pl.BlockSpec((D, 1), lambda i: (0, 0)),                  # weight, VMEM-resident
                pl.BlockSpec(memory_space=pltpu.MemorySpace.SMEM),       # bias scalar in SMEM
            ],
            out_specs=pl.BlockSpec((tb, 1), lambda i: (i, 0)),
        ),
        compiler_params=pltpu.CompilerParams(
            dimension_semantics=("parallel",),        # batch rows independent -> megacore on v7x
            vmem_limit_bytes=48 * 1024 * 1024,        # headroom above 32 MiB default, < v7x 64 MiB
        ),
        cost_estimate=cost,
    )(x, w_t, b2)


def _init_params(key, input_dim):
    """Deterministic init mirroring the PyTorch module's __init__."""
    k_w, k_b = jax.random.split(key)
    # xavier_normal_ with gain = calculate_gain('relu') = sqrt(2)
    gain = jnp.sqrt(2.0)
    fan_in, fan_out = input_dim, 1
    std = gain * jnp.sqrt(2.0 / (fan_in + fan_out))
    weight = std * jax.random.normal(k_w, (1, input_dim), dtype=jnp.float32)
    # nn.Linear default bias init: U(-1/sqrt(fan_in), 1/sqrt(fan_in))
    bound = 1.0 / jnp.sqrt(float(fan_in))
    bias = jax.random.uniform(k_b, (1,), dtype=jnp.float32,
                              minval=-bound, maxval=bound)
    return weight, bias


if __name__ == "__main__":
    key = jax.random.PRNGKey(0)
    k_x, k_p = jax.random.split(key)

    batch, input_dim = 16, 32
    x = jax.random.normal(k_x, (batch, input_dim), dtype=jnp.float32)
    weight, bias = _init_params(k_p, input_dim)

    # block_batch=8 -> grid=(2,) so the tiled/pipelined path is actually exercised.
    out = logistic_regression(x, weight, bias, block_batch=8)
    out = jax.block_until_ready(out)

    # Reference check (plain JAX)
    ref = jax.nn.sigmoid(x @ weight.T + bias)
    assert out.shape == (batch, 1)
    assert jnp.allclose(out, ref, atol=1e-5, rtol=1e-5)

    print("KERNEL_OK")
</pallas_src>

<mosaic_0001>
module attributes {stable_mosaic.version = 11 : i64} {
  func.func @_logreg_kernel(%arg0: i32, %arg1: memref<8x32xf32, #tpu.memory_space<vmem>>, %arg2: memref<32x1xf32, #tpu.memory_space<vmem>>, %arg3: memref<1x1xf32, #tpu.memory_space<smem>>, %arg4: memref<8x1xf32, #tpu.memory_space<vmem>>) attributes {dimension_semantics = [#tpu.dimension_semantics<parallel>], iteration_bounds = array<i64: 2>, scalar_prefetch = 0 : i64, scratch_operands = 0 : i64, tpu.core_type = #tpu.core_type<tc>, window_params = [{transform_indices = @transform_0, window_bounds = array<i64: 8, 32>}, {pipeline_mode = #tpu.pipeline_mode<synchronous>, transform_indices = @transform_1, window_bounds = array<i64: 32, 1>}, {transform_indices = @transform_2, window_bounds = array<i64: 1, 1>}, {transform_indices = @transform_3, window_bounds = array<i64: 8, 1>}]} {
    %c0 = arith.constant 0 : index
    %c0_0 = arith.constant 0 : index
    %0 = vector.load %arg1[%c0, %c0_0] : memref<8x32xf32, #tpu.memory_space<vmem>>, vector<8x32xf32>
    %c0_1 = arith.constant 0 : index
    %c0_2 = arith.constant 0 : index
    %1 = vector.load %arg2[%c0_1, %c0_2] : memref<32x1xf32, #tpu.memory_space<vmem>>, vector<32x1xf32>
    %cst = arith.constant dense<0.000000e+00> : vector<8x1xf32>
    %2 = tpu.matmul %0, %1, %cst {dimension_numbers = #tpu.dot_dimension_numbers<[1], [0], [0], [1], [0, 0, 1, 1], [], []>} : vector<8x32xf32>, vector<32x1xf32>, vector<8x1xf32> -> vector<8x1xf32>
    %c0_3 = arith.constant 0 : index
    %c0_4 = arith.constant 0 : index
    %3 = memref.load %arg3[%c0_3, %c0_4] : memref<1x1xf32, #tpu.memory_space<smem>>
    %4 = vector.broadcast %3 : f32 to vector<8x1xf32>
    %5 = arith.addf %2, %4 : vector<8x1xf32>
    %6 = arith.negf %5 : vector<8x1xf32>
    %7 = math.exp %6 : vector<8x1xf32>
    %cst_5 = arith.constant 1.000000e+00 : f32
    %8 = vector.broadcast %cst_5 : f32 to vector<8x1xf32>
    %9 = arith.addf %8, %7 : vector<8x1xf32>
    %10 = arith.divf %8, %9 : vector<8x1xf32>
    %c0_6 = arith.constant 0 : index
    %c0_7 = arith.constant 0 : index
    %11 = vector.load %arg4[%c0_6, %c0_7] : memref<8x1xf32, #tpu.memory_space<vmem>>, vector<8x1xf32>
    tpu.vector_store %arg4[%c0_6, %c0_7], %10 {strides = array<i32>} : memref<8x1xf32, #tpu.memory_space<vmem>>, vector<8x1xf32>,
    return
  }
  func.func @transform_0(%arg0: i32) -> (i32, i32) {
    %c0_i32 = arith.constant 0 : i32
    %c0_i32_0 = arith.constant 0 : i32
    return %arg0, %c0_i32 : i32, i32
  }
  func.func @transform_1(%arg0: i32) -> (i32, i32) {
    %c0_i32 = arith.constant 0 : i32
    %c0_i32_0 = arith.constant 0 : i32
    %c0_i32_1 = arith.constant 0 : i32
    return %c0_i32, %c0_i32_0 : i32, i32
  }
  func.func @transform_2(%arg0: i32) -> (i32, i32) {
    %c0_i32 = arith.constant 0 : i32
    %c0_i32_0 = arith.constant 0 : i32
    %c0_i32_1 = arith.constant 0 : i32
    return %c0_i32, %c0_i32_0 : i32, i32
  }
  func.func @transform_3(%arg0: i32) -> (i32, i32) {
    %c0_i32 = arith.constant 0 : i32
    %c0_i32_0 = arith.constant 0 : i32
    return %arg0, %c0_i32 : i32, i32
  }
}

</mosaic_0001>

<llo_original>
// kernel: tpu_custom_call.1
$region0: #{tpu_custom_call.1}
  #allocation0 [shape = 'u32[]', space=smem, size = 0x4, offset = 0x4, fixed_abs, tag = 'smem constant byte address 0x4 - core index']
  #allocation1 [shape = 'u32[72,128]{1,0:T(1,128)}', space=vmem, size = 0x9000, scoped, tag = 'internal scratch']
  #allocation2 [shape = 'f32[1,1]{1,0:T(1,128)S(6)}', space=smem, size = 0x200, scoped, tag = 'scoped memory for tpu_custom_call.1']
  %s0 = inlined_call_operand.vmem [shape: f32[16,32], index: 0, kind: input, shape index: {}]
  %s1 = inlined_call_operand.vmem [shape: f32[32,1], index: 1, kind: input, shape index: {}]
  %s2 = inlined_call_operand.<no memory space> [shape: f32[1,1], index: 2, kind: input, shape index: {}]
  %s3 = inlined_call_operand.vmem [shape: f32[16,1], index: 3, kind: output, shape index: {}]
  %s4 = sld [smem:[#allocation0]]
  $region45: #{tpu_custom_call.1} parent=0
    _
  %s6 = ssub.s32 1, %s4
  %s7 = scalar_select 0, %s6, %s4
  %8 = sst [smem:[#allocation2]] %s2
  loop: start=0, step=1, limit=4
  $region2: #{tpu_custom_call.1} parent=0 // loop_pre_header
    _
  $region3: #{tpu_custom_call.1} parent=0 // loop_header
    %s10 = sphi 0, %s14
    %p11 = scmp.ge.s32.totalorder %s10, 4
    %s20 = sphi 0, %s22
    %s23 = sphi 0, %s20
    %s24 = sphi 0, %s23
    %s40 = sphi 0, %s24
    %s44 = sphi 0, %s44
    %s46 = sphi 0, %s44
    %s47 = sphi 0, %s46
    %s61 = sphi 0, %s47
    %s65 = sphi 0, %s65
    %s67 = sphi 0, %s65
    %s68 = sphi 0, %s67
    %s82 = sphi 0, %s68
    %s88 = sphi 0, %s90
    %s91 = sphi 0, %s88
    %s92 = sphi 0, %s91
    %s108 = sphi 0, %s92
  $region4: #{tpu_custom_call.1} parent=0 // loop_header_branch
    %13 = sbr.rel (%p11) target = $region8
  $region5: #{tpu_custom_call.1} parent=0 // loop_body
    %s15 = ssub.s32 %s10, 1
    %s16 = ssub.s32 %s10, 2
    %s17 = sadd.s32 %s10, 1
    %s18 = ssub.s32 %s10, %s17
    %p19 = scmp.eq.s32.totalorder %s18, 0
    %s21 = sadd.s32 %s20, 1
    %s22 = scalar_select %p19, %s20, %s21
    %p25 = pneg %p19
    %p26 = scmp.eq.s32.totalorder %s10, 1
    %p27 = por %p25, %p26
    %p28 = scmp.ne.s32.totalorder %s20, %s23
    %p29 = scmp.eq.s32.totalorder %s10, 0
    %p30 = por %p28, %p29
    %p31 = scmp.ne.s32.totalorder %s20, %s23
    %p32 = scmp.eq.s32.totalorder %s15, 1
    %p33 = por %p31, %p32
    %p34 = scmp.ne.s32.totalorder %s23, %s24
    %p35 = scmp.eq.s32.totalorder %s15, 0
    %p36 = por %p34, %p35
    %p37 = scmp.ne.s32.totalorder %s23, %s24
    %p38 = scmp.eq.s32.totalorder %s16, 1
    %p39 = por %p37, %p38
    %p41 = scmp.ne.s32.totalorder %s24, %s40
    %p42 = scmp.eq.s32.totalorder %s16, 0
    %p43 = por %p41, %p42
    %s45 = sadd.s32 %s44, 1
    %p48 = scmp.eq.s32.totalorder %s10, 1
    %p49 = scmp.ne.s32.totalorder %s44, %s46
    %p50 = scmp.eq.s32.totalorder %s10, 0
    %p51 = por %p49, %p50
    %p52 = scmp.ne.s32.totalorder %s44, %s46
    %p53 = scmp.eq.s32.totalorder %s15, 1
    %p54 = por %p52, %p53
    %p55 = scmp.ne.s32.totalorder %s46, %s47
    %p56 = scmp.eq.s32.totalorder %s15, 0
    %p57 = por %p55, %p56
    %p58 = scmp.ne.s32.totalorder %s46, %s47
    %p59 = scmp.eq.s32.totalorder %s16, 1
    %p60 = por %p58, %p59
    %p62 = scmp.ne.s32.totalorder %s47, %s61
    %p63 = scmp.eq.s32.totalorder %s16, 0
    %p64 = por %p62, %p63
    %s66 = sadd.s32 %s65, 1
    %p69 = scmp.eq.s32.totalorder %s10, 1
    %p70 = scmp.ne.s32.totalorder %s65, %s67
    %p71 = scmp.eq.s32.totalorder %s10, 0
    %p72 = por %p70, %p71
    %p73 = scmp.ne.s32.totalorder %s65, %s67
    %p74 = scmp.eq.s32.totalorder %s15, 1
    %p75 = por %p73, %p74
    %p76 = scmp.ne.s32.totalorder %s67, %s68
    %p77 = scmp.eq.s32.totalorder %s15, 0
    %p78 = por %p76, %p77
    %p79 = scmp.ne.s32.totalorder %s67, %s68
    %p80 = scmp.eq.s32.totalorder %s16, 1
    %p81 = por %p79, %p80
    %p83 = scmp.ne.s32.totalorder %s68, %s82
    %p84 = scmp.eq.s32.totalorder %s16, 0
    %p85 = por %p83, %p84
    %s86 = ssub.s32 %s10, %s17
    %p87 = scmp.eq.s32.totalorder %s86, 0
    %s89 = sadd.s32 %s88, 1
    %s90 = scalar_select %p87, %s88, %s89
    %p93 = pneg %p87
    %p94 = scmp.eq.s32.totalorder %s10, 1
    %p95 = por %p93, %p94
    %p96 = scmp.ne.s32.totalorder %s88, %s91
    %p97 = scmp.eq.s32.totalorder %s10, 0
    %p98 = por %p96, %p97
    %p99 = scmp.ne.s32.totalorder %s88, %s91
    %p100 = scmp.eq.s32.totalorder %s15, 1
    %p101 = por %p99, %p100
    %p102 = scmp.ne.s32.totalorder %s91, %s92
    %p103 = scmp.eq.s32.totalorder %s15, 0
    %p104 = por %p102, %p103
    %p105 = scmp.ne.s32.totalorder %s91, %s92
    %p106 = scmp.eq.s32.totalorder %s16, 1
    %p107 = por %p105, %p106
    %p109 = scmp.ne.s32.totalorder %s92, %s108
    %p110 = scmp.eq.s32.totalorder %s16, 0
    %p111 = por %p109, %p110
    %p112 = scmp.le.s32.totalorder 1, %s10
    %p113 = scmp.lt.s32.totalorder %s10, 3
    %p114 = pnand %p112, %p113
    %p115 = pneg %p114
    // Predicated region
    $region9: #{tpu_custom_call.1} parent=5 // pred_check
      _
    $region10: #{tpu_custom_call.1} parent=5 // pred_check_branch
      %117 = sbr.rel (%p114) target = $region12
    $region11: #{tpu_custom_call.1} parent=5 // pred_region
      %s118 = ssub.s32 %s10, 1
      // Predicated region
      $region13: #{tpu_custom_call.1} parent=11 // pred_check
        %p119 = pneg %p57
      $region14: #{tpu_custom_call.1} parent=11 // pred_check_branch
        %121 = sbr.rel (%p119) target = $region16
      $region15: #{tpu_custom_call.1} parent=11 // pred_region
        _
      $region16: #{tpu_custom_call.1} parent=11 // pred_fallthru
        _
      // Predicated region
      $region17: #{tpu_custom_call.1} parent=11 // pred_check
        %p122 = pneg %p78
      $region18: #{tpu_custom_call.1} parent=11 // pred_check_branch
        %124 = sbr.rel (%p122) target = $region20
      $region19: #{tpu_custom_call.1} parent=11 // pred_region
        _
      $region20: #{tpu_custom_call.1} parent=11 // pred_fallthru
        _
    $region12: #{tpu_custom_call.1} parent=5 // pred_fallthru
      _
    %p125 = scmp.lt.s32.totalorder %s10, 2
    // Predicated region
    $region21: #{tpu_custom_call.1} parent=5 // pred_check
      %p126 = pneg %p125
    $region22: #{tpu_custom_call.1} parent=5 // pred_check_branch
      %128 = sbr.rel (%p126) target = $region24
    $region23: #{tpu_custom_call.1} parent=5 // pred_region
      // Predicated region
      $region25: #{tpu_custom_call.1} parent=23 // pred_check
        %p129 = pneg %p30
      $region26: #{tpu_custom_call.1} parent=23 // pred_check_branch
        %131 = sbr.rel (%p129) target = $region28
      $region27: #{tpu_custom_call.1} parent=23 // pred_region
        %p132 = scmp.lt.s32.totalorder %s10, 1
        %s133 = scalar_select %p132, %s10, 1
        %s134 = smul.addr %s133, 8
        %s135 = scalar_lea.vmem %s0, %s134
      $region28: #{tpu_custom_call.1} parent=23 // pred_fallthru
        _
    $region24: #{tpu_custom_call.1} parent=5 // pred_fallthru
      _
    %p136 = scmp.le.s32.totalorder 1, %s10
    %p137 = scmp.lt.s32.totalorder %s10, 3
    %p138 = pnand %p136, %p137
    %p139 = pneg %p138
    // Predicated region
    $region29: #{tpu_custom_call.1} parent=5 // pred_check
      _
    $region30: #{tpu_custom_call.1} parent=5 // pred_check_branch
      %141 = sbr.rel (%p138) target = $region32
    $region31: #{tpu_custom_call.1} parent=5 // pred_region
      %s142 = ssub.s32 %s10, 1
      %p143 = scmp.lt.s32.totalorder %s15, 1
      %s144 = scalar_select %p143, %s15, 1
      %s145 = smul.addr %s144, 8
      %s146 = scalar_lea.vmem %s0, %s145
      %p147 = pneg %p36
      %p148 = pneg %p33
      %p149 = pneg %p57
      %p150 = pneg %p54
      %p151 = pneg %p78
      %p152 = pneg %p75
      %p153 = pneg %p104
      %p154 = pneg %p101
      %p155 = scmp.lt.s32.totalorder %s15, 1
      %s156 = scalar_select %p155, %s15, 1
      %s157 = smul.addr %s156, 8
      %s158 = scalar_lea.vmem %s3, %s157
      %p159 = scmp.lt.s32.totalorder %s15, 1
      %s160 = scalar_select %p159, %s15, 1
      %s161 = smul.addr %s160, 8
      %s162 = scalar_lea.vmem %s0, %s161
      %p163 = scmp.lt.s32.totalorder %s15, 1
      %s164 = scalar_select %p163, %s15, 1
      %s165 = smul.addr %s164, 8
      %s166 = scalar_lea.vmem %s3, %s165
      %v167 = vld [vmem:[%s162] sm:$0xff]
      %v168 = vld [vmem:[%s1] sm:$0xff]
      %v169 = vld [vmem:[%s1 + $0x8] sm:$0xff]
      %v170 = vld [vmem:[%s1 + $0x10] sm:$0xff]
      %v171 = vld [vmem:[%s1 + $0x18] sm:$0xff]
      %s172 = sld [smem:[#allocation2]]
      %v173 = vstv %s172
      %vm174 = vcmask 261120
      %v176 = vsel %vm174, %v167, 0
      %178 = vmatpush.msra.mxu0 0.0
      %179 = vmatpush.msra.mxu0 0.0
      %180 = vmatpush.msra.mxu0 0.0
      %181 = vmatpush.msra.mxu0 0.0
      %182 = vmatpush.msra.mxu0 0.0
      %183 = vmatpush.msra.mxu0 0.0
      %184 = vmatpush.msra.mxu0 0.0
      %185 = vmatpush.msra.mxu0 0.0
      %186 = vmatpush.msra.mxu0 0.0
      %187 = vmatpush.msra.mxu0 0.0
      %188 = vmatpush.msra.mxu0 0.0
      %189 = vmatpush.msra.mxu0 0.0
      %190 = vmatpush.msra.mxu0 %v171
      %191 = vmatpush.msra.mxu0 %v170
      %192 = vmatpush.msra.mxu0 %v169
      %193 = vmatpush.msra.mxu0 %v168
      %194 = vmatmul.f32.gmra.mxu0 %v176
      %v195 = vpop.f32.mrf.mxu0
      %v196 = vadd.f32 %v173, %v195
      %197 = vdwg.mxu0
      %v198 = vxor.u32 %v196, 2147483648
      %v199 = vmul.f32 %v198, 1.442695
      %v200 = vpow.pop %v199
      %v201 = vadd.f32 %v200, 1.0
      %v202 = vrcp.pop %v201
      %v203 = vmul.f32 %v201, %v202
      %v204 = vsub.f32 1.0, %v203
      %v205 = vmul.f32 %v202, %v204
      %v206 = vadd.f32 %v202, %v205
      %vm207 = vweird.f32 %v201
      %vm208 = vweird.f32 %v202
      %vm209 = vmor %vm207, %vm208
      %v210 = vsel %vm209, %v202, %v206
      %v211 = vand.u32 2147483647, %v201
      %vm212 = vcmp.eq.f32.partialorder %v211, 8.507059e+37
      %v213 = vand.u32 %v201, 2147483648
      %v214 = vor.u32 1.1754944e-38, %v213
      %v215 = vsel %vm212, %v214, %v210
      %v216 = vmul.f32 1.0, %v215
      %vm217 = vcmask 7168
      %218 = vst.msk [vmem:[%s166] sm:$0xff] %vm217, %v216
      %p219 = scmp.lt.s32.totalorder %s15, 1
      %s220 = scalar_select %p219, %s15, 1
      %s221 = smul.addr %s220, 8
      %s222 = scalar_lea.vmem %s3, %s221
      // Predicated region
      $region33: #{tpu_custom_call.1} parent=31 // pred_check
        %p223 = pneg %p101
      $region34: #{tpu_custom_call.1} parent=31 // pred_check_branch
        %225 = sbr.rel (%p223) target = $region36
      $region35: #{tpu_custom_call.1} parent=31 // pred_region
        _
      $region36: #{tpu_custom_call.1} parent=31 // pred_fallthru
        _
    $region32: #{tpu_custom_call.1} parent=5 // pred_fallthru
      _
    %p226 = scmp.le.s32.totalorder 2, %s10
    // Predicated region
    $region37: #{tpu_custom_call.1} parent=5 // pred_check
      %p227 = pneg %p226
    $region38: #{tpu_custom_call.1} parent=5 // pred_check_branch
      %229 = sbr.rel (%p227) target = $region40
    $region39: #{tpu_custom_call.1} parent=5 // pred_region
      %s230 = ssub.s32 %s10, 2
      // Predicated region
      $region41: #{tpu_custom_call.1} parent=39 // pred_check
        %p231 = pneg %p107
      $region42: #{tpu_custom_call.1} parent=39 // pred_check_branch
        %233 = sbr.rel (%p231) target = $region44
      $region43: #{tpu_custom_call.1} parent=39 // pred_region
        %p234 = scmp.lt.s32.totalorder %s16, 1
        %s235 = scalar_select %p234, %s16, 1
        %s236 = smul.addr %s235, 8
        %s237 = scalar_lea.vmem %s3, %s236
      $region44: #{tpu_custom_call.1} parent=39 // pred_fallthru
        _
    $region40: #{tpu_custom_call.1} parent=5 // pred_fallthru
      _
  $region6: #{tpu_custom_call.1} parent=0 // loop_footer
    %s14 = sadd.s32 1, %s10
  $region7: #{tpu_custom_call.1} parent=0 // loop_footer_branch
    %9 = sbr.rel target = $region3
  $region8: #{tpu_custom_call.1} parent=0 // loop_exit
    _

</llo_original>
